<compile_context>
chip_gen: v5e
topology: v5e:2x2
jax: 0.10.0
libtpu: 0.0.40
codegen_flags: <defaults>
</compile_context>

<pallas_src>
import math
from functools import partial

import jax
import jax.numpy as jnp
from jax.experimental import pallas as pl
from jax.experimental.pallas import tpu as pltpu


def _round_up(x, m):
    return (x + m - 1) // m * m


def _round_down(x, m):
    return (x // m) * m


def _lora_kernel(x_ref, b_ref, a_ref, o_ref, *, scaling):
    # x_ref: (tm, tn)   tile of the frozen weight X
    # b_ref: (tm, rank) row-tile of the "left" low-rank factor
    # a_ref: (rank, tn) col-tile of the "right" low-rank factor
    delta = jnp.dot(
        b_ref[...],
        a_ref[...],
        preferred_element_type=jnp.float32,
        precision=jax.lax.Precision.HIGHEST,  # true-f32 delta; hidden under DMA
    )
    o_ref[...] = (x_ref[...].astype(jnp.float32) + delta * scaling).astype(o_ref.dtype)


def _chip_profile():
    """Generation-aware tile byte budget / VMEM cap / core count."""
    kind = ""
    try:
        kind = jax.devices()[0].device_kind.lower()
    except Exception:
        pass
    vmem_phys = None
    try:
        vmem_phys = int(pltpu.get_tpu_info().vmem_capacity_bytes)
    except Exception:
        pass

    is_v7 = ("v7" in kind) or (vmem_phys is not None and vmem_phys <= (64 << 20))
    is_v5e = ("v5e" in kind) or ("v5 lite" in kind) or ("v5litepod" in kind)

    if is_v7:
        # 3.2 TB/s per TC but only 64 MiB VMEM: biggest tiles, conservative cap,
        # and 2 TensorCores per chip to balance.
        return dict(tile_bytes=8 << 20, vmem_cap=48 << 20, cores=2)
    if is_v5e:
        # ~820 GB/s: 4 MiB tiles already hit ~96% of roofline; bigger only adds
        # VMEM pressure / compile time.
        return dict(tile_bytes=4 << 20, vmem_cap=96 << 20, cores=1)
    # v6e and default: 128 MiB physical VMEM, push to 8 MiB tiles.
    return dict(tile_bytes=8 << 20, vmem_cap=96 << 20, cores=1)


def _choose_tiles(rows, cols, itemsize, tile_bytes, cores):
    """Pick (tm, tn) from a byte budget; lane-dense, dtype-aware."""
    sub = max(8, 32 // itemsize)  # sublane packing multiple: f32 8, bf16 16, int8 32
    full_bytes = rows * cols * itemsize

    # Single block: whole weight in one tile.
    if full_bytes <= tile_bytes:
        tm, tn = rows, cols
        # v7x: keep both TensorCores busy once the weight is non-trivial.
        if cores > 1 and full_bytes > (1 << 20) and rows >= cores * sub:
            tm = _round_up(pl.cdiv(rows, cores), sub)
        return tm, tn

    # Full-width row stripes whenever they fit the budget: contiguous HBM
    # bursts, lane-dense stores, and the (rank, cols) factor is fetched once.
    if cols * itemsize * sub <= tile_bytes:
        tn = cols
        tm = max(sub, _round_down(tile_bytes // (cols * itemsize), sub))
        return tm, tn

    # Extremely wide weights (rare for LoRA): tile the lane dim too.
    tm = rows if rows <= sub else sub
    tn = max(128, _round_down(tile_bytes // (max(tm, 1) * itemsize), 128))
    if tn >= cols:
        tn = cols
    else:
        # Prefer a tn (multiple of 128) that divides cols so the tail column
        # tile stays lane-dense / unmasked.
        for cand in range(tn, 127, -128):
            if cols % cand == 0:
                tn = cand
                break
    return tm, tn


def lora_forward(X, lora_A, lora_B, scaling, *, fan_in_fan_out=False,
                 tile_bytes=None, donate_x=False):
    """X + (lora_B @ lora_A) * scaling   (factors swapped if fan_in_fan_out)."""
    rows, cols = X.shape
    left, right = (lora_A, lora_B) if fan_in_fan_out else (lora_B, lora_A)
    rank = left.shape[-1]
    assert left.shape == (rows, rank)
    assert right.shape == (rank, cols)

    # TODO(synk): lora_dropout_p > 0 path (column mask-scaled lora_A) not implemented.

    itemsize = jnp.dtype(X.dtype).itemsize
    a_item = jnp.dtype(left.dtype).itemsize

    prof = _chip_profile()
    if tile_bytes is None:
        tile_bytes = prof["tile_bytes"]

    tm, tn = _choose_tiles(rows, cols, itemsize, tile_bytes, prof["cores"])
    grid = (pl.cdiv(rows, tm), pl.cdiv(cols, tn))

    # VMEM budget from *padded* footprints: X/out tiles double-buffered, the
    # low-rank factors pad to 128 lanes / 8..32 sublanes, plus ~2 MiB margin
    # for Mosaic internal scratch.  Capped generation-aware (v7x: 48 MiB).
    sub = max(8, 32 // itemsize)
    sub_a = max(8, 32 // a_item)
    tm_p, tn_p = _round_up(tm, sub), _round_up(tn, 128)
    x_tile_b = tm_p * tn_p * itemsize
    b_tile_b = tm_p * 128 * a_item
    a_tile_b = _round_up(rank, sub_a) * tn_p * a_item
    work = 2 * (2 * x_tile_b) + 2 * b_tile_b + 2 * a_tile_b + (2 << 20)
    vmem_limit = int(min(max(work, 24 << 20), prof["vmem_cap"]))

    kernel = partial(_lora_kernel, scaling=float(scaling))

    return pl.pallas_call(
        kernel,
        out_shape=jax.ShapeDtypeStruct((rows, cols), X.dtype),
        grid_spec=pltpu.PrefetchScalarGridSpec(
            num_scalar_prefetch=0,
            grid=grid,
            in_specs=[
                pl.BlockSpec((tm, tn), lambda i, j: (i, j)),     # X tile (streamed)
                pl.BlockSpec((tm, rank), lambda i, j: (i, 0)),   # left rows (per row-tile)
                pl.BlockSpec((rank, tn), lambda i, j: (0, j)),   # right cols (constant when tn == cols)
            ],
            out_specs=pl.BlockSpec((tm, tn), lambda i, j: (i, j)),
        ),
        compiler_params=pltpu.CompilerParams(
            dimension_semantics=("parallel", "parallel"),
            vmem_limit_bytes=vmem_limit,
        ),
        input_output_aliases=({0: 0} if donate_x else {}),
    )(X, left, right)


def _ref_lora(X, lora_A, lora_B, scaling, fan_in_fan_out=False):
    left, right = (lora_A, lora_B) if fan_in_fan_out else (lora_B, lora_A)
    d = jnp.dot(left.astype(jnp.float32), right.astype(jnp.float32),
                precision=jax.lax.Precision.HIGHEST)
    return (X.astype(jnp.float32) + d * scaling).astype(X.dtype)


if __name__ == "__main__":
    key = jax.random.PRNGKey(0)
    kx, ka, kb, kx2, ka2, kb2, kx3, ka3, kb3, kx4, ka4, kb4 = jax.random.split(key, 12)

    rank, lora_alpha = 4, 1
    scaling = lora_alpha / rank

    # ---- Case 1: small Linear weight -> single-block fast path ---------------
    # LoRAParametrization.from_linear on Linear(fan_in=256, fan_out=64).
    fan_in, fan_out = 256, 64
    X = jax.random.normal(kx, (fan_out, fan_in), dtype=jnp.float32)
    bound = math.sqrt(1.0 / fan_in)  # kaiming_uniform_(a=sqrt(5)) equivalent
    lora_A = jax.random.uniform(ka, (rank, fan_in), dtype=jnp.float32,
                                minval=-bound, maxval=bound)
    # torch inits lora_B to zeros (forward(X) == X trivially); use nonzero
    # deterministic values so the kernel compute is actually exercised.
    lora_B = jax.random.normal(kb, (fan_out, rank), dtype=jnp.float32) * 0.02

    out = jax.block_until_ready(lora_forward(X, lora_A, lora_B, scaling))
    ref = _ref_lora(X, lora_A, lora_B, scaling)
    assert out.shape == X.shape
    assert jnp.allclose(out, ref, atol=1e-5, rtol=1e-5), "case 1 mismatch vs reference"

    # ---- Case 2: tiled row-stripe path (small tile budget forces a grid) -----
    fan_out2, fan_in2 = 352, 1280   # -> grid (8, 1) with a ragged last row tile
    X2 = jax.random.normal(kx2, (fan_out2, fan_in2), dtype=jnp.float32)
    bound2 = math.sqrt(1.0 / fan_in2)
    lora_A2 = jax.random.uniform(ka2, (rank, fan_in2), dtype=jnp.float32,
                                 minval=-bound2, maxval=bound2)
    lora_B2 = jax.random.normal(kb2, (fan_out2, rank), dtype=jnp.float32) * 0.02

    out2 = jax.block_until_ready(
        lora_forward(X2, lora_A2, lora_B2, scaling, tile_bytes=256 << 10))
    ref2 = _ref_lora(X2, lora_A2, lora_B2, scaling)
    assert out2.shape == X2.shape
    assert jnp.allclose(out2, ref2, atol=1e-5, rtol=1e-5), "case 2 mismatch vs reference"

    # ---- Case 3: Embedding (fan_in_fan_out=True), X + (A @ B) * scaling ------
    emb_fan_in, emb_fan_out = 96, 80      # (num_embeddings, embedding_dim)
    X3 = jax.random.normal(kx3, (emb_fan_in, emb_fan_out), dtype=jnp.float32)
    bound3 = math.sqrt(1.0 / emb_fan_in)
    lora_A3 = jax.random.uniform(ka3, (emb_fan_in, rank), dtype=jnp.float32,
                                 minval=-bound3, maxval=bound3)
    lora_B3 = jax.random.normal(kb3, (rank, emb_fan_out), dtype=jnp.float32) * 0.02

    out3 = jax.block_until_ready(
        lora_forward(X3, lora_A3, lora_B3, scaling, fan_in_fan_out=True))
    ref3 = _ref_lora(X3, lora_A3, lora_B3, scaling, fan_in_fan_out=True)
    assert out3.shape == X3.shape
    assert jnp.allclose(out3, ref3, atol=1e-5, rtol=1e-5), "case 3 mismatch vs reference"

    # ---- Case 4: bf16 weight, tiled path (dtype-aware sublane multiple 16) ---
    fan_out4, fan_in4 = 160, 256
    X4 = jax.random.normal(kx4, (fan_out4, fan_in4), dtype=jnp.float32).astype(jnp.bfloat16)
    bound4 = math.sqrt(1.0 / fan_in4)
    lora_A4 = jax.random.uniform(ka4, (rank, fan_in4), dtype=jnp.float32,
                                 minval=-bound4, maxval=bound4).astype(jnp.bfloat16)
    lora_B4 = (jax.random.normal(kb4, (fan_out4, rank), dtype=jnp.float32) * 0.02
               ).astype(jnp.bfloat16)

    out4 = jax.block_until_ready(
        lora_forward(X4, lora_A4, lora_B4, scaling, tile_bytes=32 << 10))
    ref4 = _ref_lora(X4, lora_A4, lora_B4, scaling)
    assert out4.shape == X4.shape
    assert jnp.allclose(out4.astype(jnp.float32), ref4.astype(jnp.float32),
                        atol=2e-2, rtol=2e-2), "case 4 mismatch vs reference"

    print("KERNEL_OK")
</pallas_src>

<mosaic_0001>
module attributes {stable_mosaic.version = 11 : i64} {
  func.func @_lora_kernel(%arg0: i32, %arg1: i32, %arg2: memref<64x256xf32, #tpu.memory_space<vmem>>, %arg3: memref<64x4xf32, #tpu.memory_space<vmem>>, %arg4: memref<4x256xf32, #tpu.memory_space<vmem>>, %arg5: memref<64x256xf32, #tpu.memory_space<vmem>>) attributes {dimension_semantics = [#tpu.dimension_semantics<parallel>, #tpu.dimension_semantics<parallel>], iteration_bounds = array<i64: 1, 1>, scalar_prefetch = 0 : i64, scratch_operands = 0 : i64, tpu.core_type = #tpu.core_type<tc>, window_params = [{transform_indices = @transform_0, window_bounds = array<i64: 64, 256>}, {transform_indices = @transform_1, window_bounds = array<i64: 64, 4>}, {transform_indices = @transform_2, window_bounds = array<i64: 4, 256>}, {transform_indices = @transform_3, window_bounds = array<i64: 64, 256>}]} {
    %c0 = arith.constant 0 : index
    %c0_0 = arith.constant 0 : index
    %0 = vector.load %arg3[%c0, %c0_0] : memref<64x4xf32, #tpu.memory_space<vmem>>, vector<64x4xf32>
    %c0_1 = arith.constant 0 : index
    %c0_2 = arith.constant 0 : index
    %1 = vector.load %arg4[%c0_1, %c0_2] : memref<4x256xf32, #tpu.memory_space<vmem>>, vector<4x256xf32>
    %cst = arith.constant dense<0.000000e+00> : vector<64x256xf32>
    %2 = tpu.matmul %0, %1, %cst {dimension_numbers = #tpu.dot_dimension_numbers<[1], [0], [0], [1], [0, 0, 1, 1], [], []>, precision = #tpu.contract_precision<fp32>} : vector<64x4xf32>, vector<4x256xf32>, vector<64x256xf32> -> vector<64x256xf32>
    %c0_3 = arith.constant 0 : index
    %c0_4 = arith.constant 0 : index
    %3 = vector.load %arg2[%c0_3, %c0_4] : memref<64x256xf32, #tpu.memory_space<vmem>>, vector<64x256xf32>
    %cst_5 = arith.constant 2.500000e-01 : f32
    %4 = vector.broadcast %cst_5 : f32 to vector<64x256xf32>
    %5 = arith.mulf %2, %4 : vector<64x256xf32>
    %6 = arith.addf %3, %5 : vector<64x256xf32>
    %c0_6 = arith.constant 0 : index
    %c0_7 = arith.constant 0 : index
    %7 = vector.load %arg5[%c0_6, %c0_7] : memref<64x256xf32, #tpu.memory_space<vmem>>, vector<64x256xf32>
    tpu.vector_store %arg5[%c0_6, %c0_7], %6 {strides = array<i32>} : memref<64x256xf32, #tpu.memory_space<vmem>>, vector<64x256xf32>,
    return
  }
  func.func @transform_0(%arg0: i32, %arg1: i32) -> (i32, i32) {
    %c0_i32 = arith.constant 0 : i32
    return %arg0, %arg1 : i32, i32
  }
  func.func @transform_1(%arg0: i32, %arg1: i32) -> (i32, i32) {
    %c0_i32 = arith.constant 0 : i32
    %c0_i32_0 = arith.constant 0 : i32
    return %arg0, %c0_i32 : i32, i32
  }
  func.func @transform_2(%arg0: i32, %arg1: i32) -> (i32, i32) {
    %c0_i32 = arith.constant 0 : i32
    %c0_i32_0 = arith.constant 0 : i32
    return %c0_i32, %arg1 : i32, i32
  }
  func.func @transform_3(%arg0: i32, %arg1: i32) -> (i32, i32) {
    %c0_i32 = arith.constant 0 : i32
    return %arg0, %arg1 : i32, i32
  }
}

</mosaic_0001>

<llo_original>
// kernel: tpu_custom_call.1
$region0: #{tpu_custom_call.1}
  #allocation0 [shape = 'u32[]', space=smem, size = 0x4, offset = 0x4, fixed_abs, tag = 'smem constant byte address 0x4 - core index']
  #allocation1 [shape = 'u32[72,128]{1,0:T(1,128)}', space=vmem, size = 0x9000, scoped, tag = 'internal scratch']
  %s0 = inlined_call_operand.hbm [shape: f32[64,256], index: 0, kind: input, shape index: {}]
  %s1 = inlined_call_operand.vmem [shape: f32[64,4], index: 1, kind: input, shape index: {}]
  %s2 = inlined_call_operand.vmem [shape: f32[4,256], index: 2, kind: input, shape index: {}]
  %s3 = inlined_call_operand.hbm [shape: f32[64,256], index: 3, kind: output, shape index: {}]
  %s4 = sld [smem:[#allocation0]]
  $region26: #{tpu_custom_call.1} parent=0
    _
  %s6 = ssub.s32 1, %s4
  %s7 = scalar_select 0, %s6, %s4
  $region1: #{tpu_custom_call.1} parent=0
    #allocation2 [shape = 'u8[65536]{0}', space=vmem, size = 0x10000, scoped, tag = 'input window, operand 0, single buffered']
    #allocation3 [shape = 's32[1]{0}', space=sflag, size = 0x4, scoped, tag = 'scoped memory for tpu_custom_call.1']
    #allocation4 [shape = 's32[1]{0}', space=sflag, size = 0x4, scoped, tag = 'scoped memory for tpu_custom_call.1']
    #allocation5 [shape = 'u8[65536]{0}', space=vmem, size = 0x10000, scoped, tag = 'output window, operand 0, single buffered']
    %8 = vsyncpa [#allocation3], 0
    %9 = vsyncpa [#allocation4], 0
    // Predicated region
    $region2: #{tpu_custom_call.1} parent=1 // pred_check
      _
    $region3: #{tpu_custom_call.1} parent=1 // pred_check_branch
      %11 = sbr.rel (0) target = $region5
    $region4: #{tpu_custom_call.1} parent=1 // pred_region
      %13 = vsyncadd [#allocation3], 0
      %s14 = sshll.u32 %s0, 4
      %s15 = int_to_ptr.hbm [resolvable:$true] %s14
      %s16 = sshll.u32 [#allocation2], 4
      %s17 = int_to_ptr.vmem [resolvable:$true] %s16
      %22 = dma.hbm_to_vmem [thread:$0]  %s15, 2048, %s17, [#allocation3], 256, 256, 16
    $region5: #{tpu_custom_call.1} parent=1 // pred_fallthru
      _
    // Predicated region
    $region6: #{tpu_custom_call.1} parent=1 // pred_check
      _
    $region7: #{tpu_custom_call.1} parent=1 // pred_check_branch
      %24 = sbr.rel (0) target = $region9
    $region8: #{tpu_custom_call.1} parent=1 // pred_region
      _
    $region9: #{tpu_custom_call.1} parent=1 // pred_fallthru
      _
    // Predicated region
    $region10: #{tpu_custom_call.1} parent=1 // pred_check
      _
    $region11: #{tpu_custom_call.1} parent=1 // pred_check_branch
      %26 = sbr.rel (0) target = $region13
    $region12: #{tpu_custom_call.1} parent=1 // pred_region
      _
    $region13: #{tpu_custom_call.1} parent=1 // pred_fallthru
      _
    // Predicated region
    $region14: #{tpu_custom_call.1} parent=1 // pred_check
      _
    $region15: #{tpu_custom_call.1} parent=1 // pred_check_branch
      %28 = sbr.rel (0) target = $region17
    $region16: #{tpu_custom_call.1} parent=1 // pred_region
      %30 = dma.done [#allocation3], 2048
    $region17: #{tpu_custom_call.1} parent=1 // pred_fallthru
      _
    %v31 = vld [vmem:[%s1] sm:$0xff]
    %v32 = vld [vmem:[%s1 + $0x8] sm:$0xff]
    %v33 = vld [vmem:[%s1 + $0x10] sm:$0xff]
    %v34 = vld [vmem:[%s1 + $0x18] sm:$0xff]
    %v35 = vld [vmem:[%s1 + $0x20] sm:$0xff]
    %v36 = vld [vmem:[%s1 + $0x28] sm:$0xff]
    %v37 = vld [vmem:[%s1 + $0x30] sm:$0xff]
    %v38 = vld [vmem:[%s1 + $0x38] sm:$0xff]
    %v39 = vld [vmem:[%s2] sm:$0xff]
    %41 = vst [vmem:[#allocation1] ss:$2 sm:$0xff] %v39
    %v42 = vld.sshfl [vmem:[#allocation1] sm:$0xff pattern:$0x75316420]
    %v43 = vld.sshfl [vmem:[#allocation1 + $0x8] sm:$0xff pattern:$0x75316420]
    %vm44 = vcmask 31744
    %v46 = vsel %vm44, %v31, 0
    %v49 = vsel %vm44, %v32, 0
    %v52 = vsel %vm44, %v33, 0
    %v55 = vsel %vm44, %v34, 0
    %v58 = vsel %vm44, %v35, 0
    %v61 = vsel %vm44, %v36, 0
    %v64 = vsel %vm44, %v37, 0
    %v67 = vsel %vm44, %v38, 0
    %vm69 = vcmask 1043456
    %v70 = vsel %vm69, %v42, 0
    %v72 = vsel %vm69, %v43, 0
    %74 = vmatpush.msra.mxu0 0.0
    %75 = vmatpush.msra.mxu0 0.0
    %76 = vmatpush.msra.mxu0 0.0
    %77 = vmatpush.msra.mxu0 0.0
    %78 = vmatpush.msra.mxu0 0.0
    %79 = vmatpush.msra.mxu0 0.0
    %80 = vmatpush.msra.mxu0 0.0
    %81 = vmatpush.msra.mxu0 0.0
    %82 = vmatpush.msra.mxu0 0.0
    %83 = vmatpush.msra.mxu0 0.0
    %84 = vmatpush.msra.mxu0 0.0
    %85 = vmatpush.msra.mxu0 0.0
    %86 = vmatpush.msra.mxu0 0.0
    %87 = vmatpush.msra.mxu0 0.0
    %88 = vmatpush.msra.mxu0 0.0
    %v89 = vand.u32 %v70, 4294901760
    %90 = vmatpush.msra.mxu0 %v89
    %v91 = vand.u32 %v46, 4294901760
    %v92 = vsub.f32 %v46, %v91
    %v93 = vand.u32 %v92, 4294901760
    %v94 = vsub.f32 %v92, %v93
    %v95 = vand.u32 %v94, 4294901760
    %96 = vmatmul.f32.gmra.mxu0 %v95
    %v97 = vpop.f32.mrf.mxu0
    %v98 = vadd.f32 0.0, %v97
    %v99 = vand.u32 %v49, 4294901760
    %v100 = vsub.f32 %v49, %v99
    %v101 = vand.u32 %v100, 4294901760
    %v102 = vsub.f32 %v100, %v101
    %v103 = vand.u32 %v102, 4294901760
    %104 = vmatmul.f32.gmra.mxu0 %v103
    %v105 = vpop.f32.mrf.mxu0
    %v106 = vadd.f32 0.0, %v105
    %v107 = vand.u32 %v52, 4294901760
    %v108 = vsub.f32 %v52, %v107
    %v109 = vand.u32 %v108, 4294901760
    %v110 = vsub.f32 %v108, %v109
    %v111 = vand.u32 %v110, 4294901760
    %112 = vmatmul.f32.gmra.mxu0 %v111
    %v113 = vpop.f32.mrf.mxu0
    %v114 = vadd.f32 0.0, %v113
    %v115 = vand.u32 %v55, 4294901760
    %v116 = vsub.f32 %v55, %v115
    %v117 = vand.u32 %v116, 4294901760
    %v118 = vsub.f32 %v116, %v117
    %v119 = vand.u32 %v118, 4294901760
    %120 = vmatmul.f32.gmra.mxu0 %v119
    %v121 = vpop.f32.mrf.mxu0
    %v122 = vadd.f32 0.0, %v121
    %v123 = vand.u32 %v58, 4294901760
    %v124 = vsub.f32 %v58, %v123
    %v125 = vand.u32 %v124, 4294901760
    %v126 = vsub.f32 %v124, %v125
    %v127 = vand.u32 %v126, 4294901760
    %128 = vmatmul.f32.gmra.mxu0 %v127
    %v129 = vpop.f32.mrf.mxu0
    %v130 = vadd.f32 0.0, %v129
    %v131 = vand.u32 %v61, 4294901760
    %v132 = vsub.f32 %v61, %v131
    %v133 = vand.u32 %v132, 4294901760
    %v134 = vsub.f32 %v132, %v133
    %v135 = vand.u32 %v134, 4294901760
    %136 = vmatmul.f32.gmra.mxu0 %v135
    %v137 = vpop.f32.mrf.mxu0
    %v138 = vadd.f32 0.0, %v137
    %v139 = vand.u32 %v64, 4294901760
    %v140 = vsub.f32 %v64, %v139
    %v141 = vand.u32 %v140, 4294901760
    %v142 = vsub.f32 %v140, %v141
    %v143 = vand.u32 %v142, 4294901760
    %144 = vmatmul.f32.gmra.mxu0 %v143
    %v145 = vpop.f32.mrf.mxu0
    %v146 = vadd.f32 0.0, %v145
    %v147 = vand.u32 %v67, 4294901760
    %v148 = vsub.f32 %v67, %v147
    %v149 = vand.u32 %v148, 4294901760
    %v150 = vsub.f32 %v148, %v149
    %v151 = vand.u32 %v150, 4294901760
    %152 = vmatmul.f32.gmra.mxu0 %v151
    %v153 = vpop.f32.mrf.mxu0
    %v154 = vadd.f32 0.0, %v153
    %155 = vdwg.mxu0
    %156 = vmatpush.msra.mxu0 0.0
    %157 = vmatpush.msra.mxu0 0.0
    %158 = vmatpush.msra.mxu0 0.0
    %159 = vmatpush.msra.mxu0 0.0
    %160 = vmatpush.msra.mxu0 0.0
    %161 = vmatpush.msra.mxu0 0.0
    %162 = vmatpush.msra.mxu0 0.0
    %163 = vmatpush.msra.mxu0 0.0
    %164 = vmatpush.msra.mxu0 0.0
    %165 = vmatpush.msra.mxu0 0.0
    %166 = vmatpush.msra.mxu0 0.0
    %167 = vmatpush.msra.mxu0 0.0
    %168 = vmatpush.msra.mxu0 0.0
    %169 = vmatpush.msra.mxu0 0.0
    %170 = vmatpush.msra.mxu0 0.0
    %v171 = vand.u32 %v70, 4294901760
    %v172 = vsub.f32 %v70, %v171
    %v173 = vand.u32 %v172, 4294901760
    %v174 = vsub.f32 %v172, %v173
    %v175 = vand.u32 %v174, 4294901760
    %176 = vmatpush.msra.mxu0 %v175
    %v177 = vand.u32 %v46, 4294901760
    %178 = vmatmul.f32.gmra.mxu0 %v177
    %v179 = vpop.f32.mrf.mxu0
    %v180 = vadd.f32 %v98, %v179
    %v181 = vand.u32 %v49, 4294901760
    %182 = vmatmul.f32.gmra.mxu0 %v181
    %v183 = vpop.f32.mrf.mxu0
    %v184 = vadd.f32 %v106, %v183
    %v185 = vand.u32 %v52, 4294901760
    %186 = vmatmul.f32.gmra.mxu0 %v185
    %v187 = vpop.f32.mrf.mxu0
    %v188 = vadd.f32 %v114, %v187
    %v189 = vand.u32 %v55, 4294901760
    %190 = vmatmul.f32.gmra.mxu0 %v189
    %v191 = vpop.f32.mrf.mxu0
    %v192 = vadd.f32 %v122, %v191
    %v193 = vand.u32 %v58, 4294901760
    %194 = vmatmul.f32.gmra.mxu0 %v193
    %v195 = vpop.f32.mrf.mxu0
    %v196 = vadd.f32 %v130, %v195
    %v197 = vand.u32 %v61, 4294901760
    %198 = vmatmul.f32.gmra.mxu0 %v197
    %v199 = vpop.f32.mrf.mxu0
    %v200 = vadd.f32 %v138, %v199
    %v201 = vand.u32 %v64, 4294901760
    %202 = vmatmul.f32.gmra.mxu0 %v201
    %v203 = vpop.f32.mrf.mxu0
    %v204 = vadd.f32 %v146, %v203
    %v205 = vand.u32 %v67, 4294901760
    %206 = vmatmul.f32.gmra.mxu0 %v205
    %v207 = vpop.f32.mrf.mxu0
    %v208 = vadd.f32 %v154, %v207
    %209 = vdwg.mxu0
    %210 = vmatpush.msra.mxu0 0.0
    %211 = vmatpush.msra.mxu0 0.0
    %212 = vmatpush.msra.mxu0 0.0
    %213 = vmatpush.msra.mxu0 0.0
    %214 = vmatpush.msra.mxu0 0.0
    %215 = vmatpush.msra.mxu0 0.0
    %216 = vmatpush.msra.mxu0 0.0
    %217 = vmatpush.msra.mxu0 0.0
    %218 = vmatpush.msra.mxu0 0.0
    %219 = vmatpush.msra.mxu0 0.0
    %220 = vmatpush.msra.mxu0 0.0
    %221 = vmatpush.msra.mxu0 0.0
    %222 = vmatpush.msra.mxu0 0.0
    %223 = vmatpush.msra.mxu0 0.0
    %224 = vmatpush.msra.mxu0 0.0
    %v225 = vand.u32 %v70, 4294901760
    %v226 = vsub.f32 %v70, %v225
    %227 = vmatpush.msra.mxu0 %v226
    %v228 = vand.u32 %v46, 4294901760
    %v229 = vsub.f32 %v46, %v228
    %230 = vmatmul.f32.gmra.mxu0 %v229
    %v231 = vpop.f32.mrf.mxu0
    %v232 = vadd.f32 %v180, %v231
    %v233 = vand.u32 %v49, 4294901760
    %v234 = vsub.f32 %v49, %v233
    %235 = vmatmul.f32.gmra.mxu0 %v234
    %v236 = vpop.f32.mrf.mxu0
    %v237 = vadd.f32 %v184, %v236
    %v238 = vand.u32 %v52, 4294901760
    %v239 = vsub.f32 %v52, %v238
    %240 = vmatmul.f32.gmra.mxu0 %v239
    %v241 = vpop.f32.mrf.mxu0
    %v242 = vadd.f32 %v188, %v241
    %v243 = vand.u32 %v55, 4294901760
    %v244 = vsub.f32 %v55, %v243
    %245 = vmatmul.f32.gmra.mxu0 %v244
    %v246 = vpop.f32.mrf.mxu0
    %v247 = vadd.f32 %v192, %v246
    %v248 = vand.u32 %v58, 4294901760
    %v249 = vsub.f32 %v58, %v248
    %250 = vmatmul.f32.gmra.mxu0 %v249
    %v251 = vpop.f32.mrf.mxu0
    %v252 = vadd.f32 %v196, %v251
    %v253 = vand.u32 %v61, 4294901760
    %v254 = vsub.f32 %v61, %v253
    %255 = vmatmul.f32.gmra.mxu0 %v254
    %v256 = vpop.f32.mrf.mxu0
    %v257 = vadd.f32 %v200, %v256
    %v258 = vand.u32 %v64, 4294901760
    %v259 = vsub.f32 %v64, %v258
    %260 = vmatmul.f32.gmra.mxu0 %v259
    %v261 = vpop.f32.mrf.mxu0
    %v262 = vadd.f32 %v204, %v261
    %v263 = vand.u32 %v67, 4294901760
    %v264 = vsub.f32 %v67, %v263
    %265 = vmatmul.f32.gmra.mxu0 %v264
    %v266 = vpop.f32.mrf.mxu0
    %v267 = vadd.f32 %v208, %v266
    %268 = vdwg.mxu0
    %269 = vmatpush.msra.mxu0 0.0
    %270 = vmatpush.msra.mxu0 0.0
    %271 = vmatpush.msra.mxu0 0.0
    %272 = vmatpush.msra.mxu0 0.0
    %273 = vmatpush.msra.mxu0 0.0
    %274 = vmatpush.msra.mxu0 0.0
    %275 = vmatpush.msra.mxu0 0.0
    %276 = vmatpush.msra.mxu0 0.0
    %277 = vmatpush.msra.mxu0 0.0
    %278 = vmatpush.msra.mxu0 0.0
    %279 = vmatpush.msra.mxu0 0.0
    %280 = vmatpush.msra.mxu0 0.0
    %281 = vmatpush.msra.mxu0 0.0
    %282 = vmatpush.msra.mxu0 0.0
    %283 = vmatpush.msra.mxu0 0.0
    %v284 = vand.u32 %v70, 4294901760
    %285 = vmatpush.msra.mxu0 %v284
    %v286 = vand.u32 %v46, 4294901760
    %v287 = vsub.f32 %v46, %v286
    %v288 = vand.u32 %v287, 4294901760
    %289 = vmatmul.f32.gmra.mxu0 %v288
    %v290 = vpop.f32.mrf.mxu0
    %v291 = vadd.f32 %v232, %v290
    %v292 = vand.u32 %v49, 4294901760
    %v293 = vsub.f32 %v49, %v292
    %v294 = vand.u32 %v293, 4294901760
    %295 = vmatmul.f32.gmra.mxu0 %v294
    %v296 = vpop.f32.mrf.mxu0
    %v297 = vadd.f32 %v237, %v296
    %v298 = vand.u32 %v52, 4294901760
    %v299 = vsub.f32 %v52, %v298
    %v300 = vand.u32 %v299, 4294901760
    %301 = vmatmul.f32.gmra.mxu0 %v300
    %v302 = vpop.f32.mrf.mxu0
    %v303 = vadd.f32 %v242, %v302
    %v304 = vand.u32 %v55, 4294901760
    %v305 = vsub.f32 %v55, %v304
    %v306 = vand.u32 %v305, 4294901760
    %307 = vmatmul.f32.gmra.mxu0 %v306
    %v308 = vpop.f32.mrf.mxu0
    %v309 = vadd.f32 %v247, %v308
    %v310 = vand.u32 %v58, 4294901760
    %v311 = vsub.f32 %v58, %v310
    %v312 = vand.u32 %v311, 4294901760
    %313 = vmatmul.f32.gmra.mxu0 %v312
    %v314 = vpop.f32.mrf.mxu0
    %v315 = vadd.f32 %v252, %v314
    %v316 = vand.u32 %v61, 4294901760
    %v317 = vsub.f32 %v61, %v316
    %v318 = vand.u32 %v317, 4294901760
    %319 = vmatmul.f32.gmra.mxu0 %v318
    %v320 = vpop.f32.mrf.mxu0
    %v321 = vadd.f32 %v257, %v320
    %v322 = vand.u32 %v64, 4294901760
    %v323 = vsub.f32 %v64, %v322
    %v324 = vand.u32 %v323, 4294901760
    %325 = vmatmul.f32.gmra.mxu0 %v324
    %v326 = vpop.f32.mrf.mxu0
    %v327 = vadd.f32 %v262, %v326
    %v328 = vand.u32 %v67, 4294901760
    %v329 = vsub.f32 %v67, %v328
    %v330 = vand.u32 %v329, 4294901760
    %331 = vmatmul.f32.gmra.mxu0 %v330
    %v332 = vpop.f32.mrf.mxu0
    %v333 = vadd.f32 %v267, %v332
    %334 = vdwg.mxu0
    %335 = vmatpush.msra.mxu0 0.0
    %336 = vmatpush.msra.mxu0 0.0
    %337 = vmatpush.msra.mxu0 0.0
    %338 = vmatpush.msra.mxu0 0.0
    %339 = vmatpush.msra.mxu0 0.0
    %340 = vmatpush.msra.mxu0 0.0
    %341 = vmatpush.msra.mxu0 0.0
    %342 = vmatpush.msra.mxu0 0.0
    %343 = vmatpush.msra.mxu0 0.0
    %344 = vmatpush.msra.mxu0 0.0
    %345 = vmatpush.msra.mxu0 0.0
    %346 = vmatpush.msra.mxu0 0.0
    %347 = vmatpush.msra.mxu0 0.0
    %348 = vmatpush.msra.mxu0 0.0
    %349 = vmatpush.msra.mxu0 0.0
    %v350 = vand.u32 %v70, 4294901760
    %v351 = vsub.f32 %v70, %v350
    %v352 = vand.u32 %v351, 4294901760
    %353 = vmatpush.msra.mxu0 %v352
    %v354 = vand.u32 %v46, 4294901760
    %355 = vmatmul.f32.gmra.mxu0 %v354
    %v356 = vpop.f32.mrf.mxu0
    %v357 = vadd.f32 %v291, %v356
    %v358 = vand.u32 %v49, 4294901760
    %359 = vmatmul.f32.gmra.mxu0 %v358
    %v360 = vpop.f32.mrf.mxu0
    %v361 = vadd.f32 %v297, %v360
    %v362 = vand.u32 %v52, 4294901760
    %363 = vmatmul.f32.gmra.mxu0 %v362
    %v364 = vpop.f32.mrf.mxu0
    %v365 = vadd.f32 %v303, %v364
    %v366 = vand.u32 %v55, 4294901760
    %367 = vmatmul.f32.gmra.mxu0 %v366
    %v368 = vpop.f32.mrf.mxu0
    %v369 = vadd.f32 %v309, %v368
    %v370 = vand.u32 %v58, 4294901760
    %371 = vmatmul.f32.gmra.mxu0 %v370
    %v372 = vpop.f32.mrf.mxu0
    %v373 = vadd.f32 %v315, %v372
    %v374 = vand.u32 %v61, 4294901760
    %375 = vmatmul.f32.gmra.mxu0 %v374
    %v376 = vpop.f32.mrf.mxu0
    %v377 = vadd.f32 %v321, %v376
    %v378 = vand.u32 %v64, 4294901760
    %379 = vmatmul.f32.gmra.mxu0 %v378
    %v380 = vpop.f32.mrf.mxu0
    %v381 = vadd.f32 %v327, %v380
    %v382 = vand.u32 %v67, 4294901760
    %383 = vmatmul.f32.gmra.mxu0 %v382
    %v384 = vpop.f32.mrf.mxu0
    %v385 = vadd.f32 %v333, %v384
    %386 = vdwg.mxu0
    %387 = vmatpush.msra.mxu0 0.0
    %388 = vmatpush.msra.mxu0 0.0
    %389 = vmatpush.msra.mxu0 0.0
    %390 = vmatpush.msra.mxu0 0.0
    %391 = vmatpush.msra.mxu0 0.0
    %392 = vmatpush.msra.mxu0 0.0
    %393 = vmatpush.msra.mxu0 0.0
    %394 = vmatpush.msra.mxu0 0.0
    %395 = vmatpush.msra.mxu0 0.0
    %396 = vmatpush.msra.mxu0 0.0
    %397 = vmatpush.msra.mxu0 0.0
    %398 = vmatpush.msra.mxu0 0.0
    %399 = vmatpush.msra.mxu0 0.0
    %400 = vmatpush.msra.mxu0 0.0
    %401 = vmatpush.msra.mxu0 0.0
    %v402 = vand.u32 %v70, 4294901760
    %403 = vmatpush.msra.mxu0 %v402
    %v404 = vand.u32 %v46, 4294901760
    %405 = vmatmul.f32.gmra.mxu0 %v404
    %v406 = vpop.f32.mrf.mxu0
    %v407 = vadd.f32 %v357, %v406
    %v408 = vand.u32 %v49, 4294901760
    %409 = vmatmul.f32.gmra.mxu0 %v408
    %v410 = vpop.f32.mrf.mxu0
    %v411 = vadd.f32 %v361, %v410
    %v412 = vand.u32 %v52, 4294901760
    %413 = vmatmul.f32.gmra.mxu0 %v412
    %v414 = vpop.f32.mrf.mxu0
    %v415 = vadd.f32 %v365, %v414
    %v416 = vand.u32 %v55, 4294901760
    %417 = vmatmul.f32.gmra.mxu0 %v416
    %v418 = vpop.f32.mrf.mxu0
    %v419 = vadd.f32 %v369, %v418
    %v420 = vand.u32 %v58, 4294901760
    %421 = vmatmul.f32.gmra.mxu0 %v420
    %v422 = vpop.f32.mrf.mxu0
    %v423 = vadd.f32 %v373, %v422
    %v424 = vand.u32 %v61, 4294901760
    %425 = vmatmul.f32.gmra.mxu0 %v424
    %v426 = vpop.f32.mrf.mxu0
    %v427 = vadd.f32 %v377, %v426
    %v428 = vand.u32 %v64, 4294901760
    %429 = vmatmul.f32.gmra.mxu0 %v428
    %v430 = vpop.f32.mrf.mxu0
    %v431 = vadd.f32 %v381, %v430
    %v432 = vand.u32 %v67, 4294901760
    %433 = vmatmul.f32.gmra.mxu0 %v432
    %v434 = vpop.f32.mrf.mxu0
    %v435 = vadd.f32 %v385, %v434
    %436 = vdwg.mxu0
    %437 = vmatpush.msra.mxu0 0.0
    %438 = vmatpush.msra.mxu0 0.0
    %439 = vmatpush.msra.mxu0 0.0
    %440 = vmatpush.msra.mxu0 0.0
    %441 = vmatpush.msra.mxu0 0.0
    %442 = vmatpush.msra.mxu0 0.0
    %443 = vmatpush.msra.mxu0 0.0
    %444 = vmatpush.msra.mxu0 0.0
    %445 = vmatpush.msra.mxu0 0.0
    %446 = vmatpush.msra.mxu0 0.0
    %447 = vmatpush.msra.mxu0 0.0
    %448 = vmatpush.msra.mxu0 0.0
    %449 = vmatpush.msra.mxu0 0.0
    %450 = vmatpush.msra.mxu0 0.0
    %451 = vmatpush.msra.mxu0 0.0
    %v452 = vand.u32 %v72, 4294901760
    %453 = vmatpush.msra.mxu0 %v452
    %v454 = vand.u32 %v46, 4294901760
    %v455 = vsub.f32 %v46, %v454
    %v456 = vand.u32 %v455, 4294901760
    %v457 = vsub.f32 %v455, %v456
    %v458 = vand.u32 %v457, 4294901760
    %459 = vmatmul.f32.gmra.mxu0 %v458
    %v460 = vpop.f32.mrf.mxu0
    %v461 = vadd.f32 0.0, %v460
    %v462 = vand.u32 %v49, 4294901760
    %v463 = vsub.f32 %v49, %v462
    %v464 = vand.u32 %v463, 4294901760
    %v465 = vsub.f32 %v463, %v464
    %v466 = vand.u32 %v465, 4294901760
    %467 = vmatmul.f32.gmra.mxu0 %v466
    %v468 = vpop.f32.mrf.mxu0
    %v469 = vadd.f32 0.0, %v468
    %v470 = vand.u32 %v52, 4294901760
    %v471 = vsub.f32 %v52, %v470
    %v472 = vand.u32 %v471, 4294901760
    %v473 = vsub.f32 %v471, %v472
    %v474 = vand.u32 %v473, 4294901760
    %475 = vmatmul.f32.gmra.mxu0 %v474
    %v476 = vpop.f32.mrf.mxu0
    %v477 = vadd.f32 0.0, %v476
    %v478 = vand.u32 %v55, 4294901760
    %v479 = vsub.f32 %v55, %v478
    %v480 = vand.u32 %v479, 4294901760
    %v481 = vsub.f32 %v479, %v480
    %v482 = vand.u32 %v481, 4294901760
    %483 = vmatmul.f32.gmra.mxu0 %v482
    %v484 = vpop.f32.mrf.mxu0
    %v485 = vadd.f32 0.0, %v484
    %v486 = vand.u32 %v58, 4294901760
    %v487 = vsub.f32 %v58, %v486
    %v488 = vand.u32 %v487, 4294901760
    %v489 = vsub.f32 %v487, %v488
    %v490 = vand.u32 %v489, 4294901760
    %491 = vmatmul.f32.gmra.mxu0 %v490
    %v492 = vpop.f32.mrf.mxu0
    %v493 = vadd.f32 0.0, %v492
    %v494 = vand.u32 %v61, 4294901760
    %v495 = vsub.f32 %v61, %v494
    %v496 = vand.u32 %v495, 4294901760
    %v497 = vsub.f32 %v495, %v496
    %v498 = vand.u32 %v497, 4294901760
    %499 = vmatmul.f32.gmra.mxu0 %v498
    %v500 = vpop.f32.mrf.mxu0
    %v501 = vadd.f32 0.0, %v500
    %v502 = vand.u32 %v64, 4294901760
    %v503 = vsub.f32 %v64, %v502
    %v504 = vand.u32 %v503, 4294901760
    %v505 = vsub.f32 %v503, %v504
    %v506 = vand.u32 %v505, 4294901760
    %507 = vmatmul.f32.gmra.mxu0 %v506
    %v508 = vpop.f32.mrf.mxu0
    %v509 = vadd.f32 0.0, %v508
    %v510 = vand.u32 %v67, 4294901760
    %v511 = vsub.f32 %v67, %v510
    %v512 = vand.u32 %v511, 4294901760
    %v513 = vsub.f32 %v511, %v512
    %v514 = vand.u32 %v513, 4294901760
    %515 = vmatmul.f32.gmra.mxu0 %v514
    %v516 = vpop.f32.mrf.mxu0
    %v517 = vadd.f32 0.0, %v516
    %518 = vdwg.mxu0
    %519 = vmatpush.msra.mxu0 0.0
    %520 = vmatpush.msra.mxu0 0.0
    %521 = vmatpush.msra.mxu0 0.0
    %522 = vmatpush.msra.mxu0 0.0
    %523 = vmatpush.msra.mxu0 0.0
    %524 = vmatpush.msra.mxu0 0.0
    %525 = vmatpush.msra.mxu0 0.0
    %526 = vmatpush.msra.mxu0 0.0
    %527 = vmatpush.msra.mxu0 0.0
    %528 = vmatpush.msra.mxu0 0.0
    %529 = vmatpush.msra.mxu0 0.0
    %530 = vmatpush.msra.mxu0 0.0
    %531 = vmatpush.msra.mxu0 0.0
    %532 = vmatpush.msra.mxu0 0.0
    %533 = vmatpush.msra.mxu0 0.0
    %v534 = vand.u32 %v72, 4294901760
    %v535 = vsub.f32 %v72, %v534
    %v536 = vand.u32 %v535, 4294901760
    %v537 = vsub.f32 %v535, %v536
    %v538 = vand.u32 %v537, 4294901760
    %539 = vmatpush.msra.mxu0 %v538
    %v540 = vand.u32 %v46, 4294901760
    %541 = vmatmul.f32.gmra.mxu0 %v540
    %v542 = vpop.f32.mrf.mxu0
    %v543 = vadd.f32 %v461, %v542
    %v544 = vand.u32 %v49, 4294901760
    %545 = vmatmul.f32.gmra.mxu0 %v544
    %v546 = vpop.f32.mrf.mxu0
    %v547 = vadd.f32 %v469, %v546
    %v548 = vand.u32 %v52, 4294901760
    %549 = vmatmul.f32.gmra.mxu0 %v548
    %v550 = vpop.f32.mrf.mxu0
    %v551 = vadd.f32 %v477, %v550
    %v552 = vand.u32 %v55, 4294901760
    %553 = vmatmul.f32.gmra.mxu0 %v552
    %v554 = vpop.f32.mrf.mxu0
    %v555 = vadd.f32 %v485, %v554
    %v556 = vand.u32 %v58, 4294901760
    %557 = vmatmul.f32.gmra.mxu0 %v556
    %v558 = vpop.f32.mrf.mxu0
    %v559 = vadd.f32 %v493, %v558
    %v560 = vand.u32 %v61, 4294901760
    %561 = vmatmul.f32.gmra.mxu0 %v560
    %v562 = vpop.f32.mrf.mxu0
    %v563 = vadd.f32 %v501, %v562
    %v564 = vand.u32 %v64, 4294901760
    %565 = vmatmul.f32.gmra.mxu0 %v564
    %v566 = vpop.f32.mrf.mxu0
    %v567 = vadd.f32 %v509, %v566
    %v568 = vand.u32 %v67, 4294901760
    %569 = vmatmul.f32.gmra.mxu0 %v568
    %v570 = vpop.f32.mrf.mxu0
    %v571 = vadd.f32 %v517, %v570
    %572 = vdwg.mxu0
    %573 = vmatpush.msra.mxu0 0.0
    %574 = vmatpush.msra.mxu0 0.0
    %575 = vmatpush.msra.mxu0 0.0
    %576 = vmatpush.msra.mxu0 0.0
    %577 = vmatpush.msra.mxu0 0.0
    %578 = vmatpush.msra.mxu0 0.0
    %579 = vmatpush.msra.mxu0 0.0
    %580 = vmatpush.msra.mxu0 0.0
    %581 = vmatpush.msra.mxu0 0.0
    %582 = vmatpush.msra.mxu0 0.0
    %583 = vmatpush.msra.mxu0 0.0
    %584 = vmatpush.msra.mxu0 0.0
    %585 = vmatpush.msra.mxu0 0.0
    %586 = vmatpush.msra.mxu0 0.0
    %587 = vmatpush.msra.mxu0 0.0
    %v588 = vand.u32 %v72, 4294901760
    %v589 = vsub.f32 %v72, %v588
    %590 = vmatpush.msra.mxu0 %v589
    %v591 = vand.u32 %v46, 4294901760
    %v592 = vsub.f32 %v46, %v591
    %593 = vmatmul.f32.gmra.mxu0 %v592
    %v594 = vpop.f32.mrf.mxu0
    %v595 = vadd.f32 %v543, %v594
    %v596 = vand.u32 %v49, 4294901760
    %v597 = vsub.f32 %v49, %v596
    %598 = vmatmul.f32.gmra.mxu0 %v597
    %v599 = vpop.f32.mrf.mxu0
    %v600 = vadd.f32 %v547, %v599
    %v601 = vand.u32 %v52, 4294901760
    %v602 = vsub.f32 %v52, %v601
    %603 = vmatmul.f32.gmra.mxu0 %v602
    %v604 = vpop.f32.mrf.mxu0
    %v605 = vadd.f32 %v551, %v604
    %v606 = vand.u32 %v55, 4294901760
    %v607 = vsub.f32 %v55, %v606
    %608 = vmatmul.f32.gmra.mxu0 %v607
    %v609 = vpop.f32.mrf.mxu0
    %v610 = vadd.f32 %v555, %v609
    %v611 = vand.u32 %v58, 4294901760
    %v612 = vsub.f32 %v58, %v611
    %613 = vmatmul.f32.gmra.mxu0 %v612
    %v614 = vpop.f32.mrf.mxu0
    %v615 = vadd.f32 %v559, %v614
    %v616 = vand.u32 %v61, 4294901760
    %v617 = vsub.f32 %v61, %v616
    %618 = vmatmul.f32.gmra.mxu0 %v617
    %v619 = vpop.f32.mrf.mxu0
    %v620 = vadd.f32 %v563, %v619
    %v621 = vand.u32 %v64, 4294901760
    %v622 = vsub.f32 %v64, %v621
    %623 = vmatmul.f32.gmra.mxu0 %v622
    %v624 = vpop.f32.mrf.mxu0
    %v625 = vadd.f32 %v567, %v624
    %v626 = vand.u32 %v67, 4294901760
    %v627 = vsub.f32 %v67, %v626
    %628 = vmatmul.f32.gmra.mxu0 %v627
    %v629 = vpop.f32.mrf.mxu0
    %v630 = vadd.f32 %v571, %v629
    %631 = vdwg.mxu0
    %632 = vmatpush.msra.mxu0 0.0
    %633 = vmatpush.msra.mxu0 0.0
    %634 = vmatpush.msra.mxu0 0.0
    %635 = vmatpush.msra.mxu0 0.0
    %636 = vmatpush.msra.mxu0 0.0
    %637 = vmatpush.msra.mxu0 0.0
    %638 = vmatpush.msra.mxu0 0.0
    %639 = vmatpush.msra.mxu0 0.0
    %640 = vmatpush.msra.mxu0 0.0
    %641 = vmatpush.msra.mxu0 0.0
    %642 = vmatpush.msra.mxu0 0.0
    %643 = vmatpush.msra.mxu0 0.0
    %644 = vmatpush.msra.mxu0 0.0
    %645 = vmatpush.msra.mxu0 0.0
    %646 = vmatpush.msra.mxu0 0.0
    %v647 = vand.u32 %v72, 4294901760
    %648 = vmatpush.msra.mxu0 %v647
    %v649 = vand.u32 %v46, 4294901760
    %v650 = vsub.f32 %v46, %v649
    %v651 = vand.u32 %v650, 4294901760
    %652 = vmatmul.f32.gmra.mxu0 %v651
    %v653 = vpop.f32.mrf.mxu0
    %v654 = vadd.f32 %v595, %v653
    %v655 = vand.u32 %v49, 4294901760
    %v656 = vsub.f32 %v49, %v655
    %v657 = vand.u32 %v656, 4294901760
    %658 = vmatmul.f32.gmra.mxu0 %v657
    %v659 = vpop.f32.mrf.mxu0
    %v660 = vadd.f32 %v600, %v659
    %v661 = vand.u32 %v52, 4294901760
    %v662 = vsub.f32 %v52, %v661
    %v663 = vand.u32 %v662, 4294901760
    %664 = vmatmul.f32.gmra.mxu0 %v663
    %v665 = vpop.f32.mrf.mxu0
    %v666 = vadd.f32 %v605, %v665
    %v667 = vand.u32 %v55, 4294901760
    %v668 = vsub.f32 %v55, %v667
    %v669 = vand.u32 %v668, 4294901760
    %670 = vmatmul.f32.gmra.mxu0 %v669
    %v671 = vpop.f32.mrf.mxu0
    %v672 = vadd.f32 %v610, %v671
    %v673 = vand.u32 %v58, 4294901760
    %v674 = vsub.f32 %v58, %v673
    %v675 = vand.u32 %v674, 4294901760
    %676 = vmatmul.f32.gmra.mxu0 %v675
    %v677 = vpop.f32.mrf.mxu0
    %v678 = vadd.f32 %v615, %v677
    %v679 = vand.u32 %v61, 4294901760
    %v680 = vsub.f32 %v61, %v679
    %v681 = vand.u32 %v680, 4294901760
    %682 = vmatmul.f32.gmra.mxu0 %v681
    %v683 = vpop.f32.mrf.mxu0
    %v684 = vadd.f32 %v620, %v683
    %v685 = vand.u32 %v64, 4294901760
    %v686 = vsub.f32 %v64, %v685
    %v687 = vand.u32 %v686, 4294901760
    %688 = vmatmul.f32.gmra.mxu0 %v687
    %v689 = vpop.f32.mrf.mxu0
    %v690 = vadd.f32 %v625, %v689
    %v691 = vand.u32 %v67, 4294901760
    %v692 = vsub.f32 %v67, %v691
    %v693 = vand.u32 %v692, 4294901760
    %694 = vmatmul.f32.gmra.mxu0 %v693
    %v695 = vpop.f32.mrf.mxu0
    %v696 = vadd.f32 %v630, %v695
    %697 = vdwg.mxu0
    %698 = vmatpush.msra.mxu0 0.0
    %699 = vmatpush.msra.mxu0 0.0
    %700 = vmatpush.msra.mxu0 0.0
    %701 = vmatpush.msra.mxu0 0.0
    %702 = vmatpush.msra.mxu0 0.0
    %703 = vmatpush.msra.mxu0 0.0
    %704 = vmatpush.msra.mxu0 0.0
    %705 = vmatpush.msra.mxu0 0.0
    %706 = vmatpush.msra.mxu0 0.0
    %707 = vmatpush.msra.mxu0 0.0
    %708 = vmatpush.msra.mxu0 0.0
    %709 = vmatpush.msra.mxu0 0.0
    %710 = vmatpush.msra.mxu0 0.0
    %711 = vmatpush.msra.mxu0 0.0
    %712 = vmatpush.msra.mxu0 0.0
    %v713 = vand.u32 %v72, 4294901760
    %v714 = vsub.f32 %v72, %v713
    %v715 = vand.u32 %v714, 4294901760
    %716 = vmatpush.msra.mxu0 %v715
    %v717 = vand.u32 %v46, 4294901760
    %718 = vmatmul.f32.gmra.mxu0 %v717
    %v719 = vpop.f32.mrf.mxu0
    %v720 = vadd.f32 %v654, %v719
    %v721 = vand.u32 %v49, 4294901760
    %722 = vmatmul.f32.gmra.mxu0 %v721
    %v723 = vpop.f32.mrf.mxu0
    %v724 = vadd.f32 %v660, %v723
    %v725 = vand.u32 %v52, 4294901760
    %726 = vmatmul.f32.gmra.mxu0 %v725
    %v727 = vpop.f32.mrf.mxu0
    %v728 = vadd.f32 %v666, %v727
    %v729 = vand.u32 %v55, 4294901760
    %730 = vmatmul.f32.gmra.mxu0 %v729
    %v731 = vpop.f32.mrf.mxu0
    %v732 = vadd.f32 %v672, %v731
    %v733 = vand.u32 %v58, 4294901760
    %734 = vmatmul.f32.gmra.mxu0 %v733
    %v735 = vpop.f32.mrf.mxu0
    %v736 = vadd.f32 %v678, %v735
    %v737 = vand.u32 %v61, 4294901760
    %738 = vmatmul.f32.gmra.mxu0 %v737
    %v739 = vpop.f32.mrf.mxu0
    %v740 = vadd.f32 %v684, %v739
    %v741 = vand.u32 %v64, 4294901760
    %742 = vmatmul.f32.gmra.mxu0 %v741
    %v743 = vpop.f32.mrf.mxu0
    %v744 = vadd.f32 %v690, %v743
    %v745 = vand.u32 %v67, 4294901760
    %746 = vmatmul.f32.gmra.mxu0 %v745
    %v747 = vpop.f32.mrf.mxu0
    %v748 = vadd.f32 %v696, %v747
    %749 = vdwg.mxu0
    %750 = vmatpush.msra.mxu0 0.0
    %751 = vmatpush.msra.mxu0 0.0
    %752 = vmatpush.msra.mxu0 0.0
    %753 = vmatpush.msra.mxu0 0.0
    %754 = vmatpush.msra.mxu0 0.0
    %755 = vmatpush.msra.mxu0 0.0
    %756 = vmatpush.msra.mxu0 0.0
    %757 = vmatpush.msra.mxu0 0.0
    %758 = vmatpush.msra.mxu0 0.0
    %759 = vmatpush.msra.mxu0 0.0
    %760 = vmatpush.msra.mxu0 0.0
    %761 = vmatpush.msra.mxu0 0.0
    %762 = vmatpush.msra.mxu0 0.0
    %763 = vmatpush.msra.mxu0 0.0
    %764 = vmatpush.msra.mxu0 0.0
    %v765 = vand.u32 %v72, 4294901760
    %766 = vmatpush.msra.mxu0 %v765
    %v767 = vand.u32 %v46, 4294901760
    %768 = vmatmul.f32.gmra.mxu0 %v767
    %v769 = vpop.f32.mrf.mxu0
    %v770 = vadd.f32 %v720, %v769
    %v771 = vand.u32 %v49, 4294901760
    %772 = vmatmul.f32.gmra.mxu0 %v771
    %v773 = vpop.f32.mrf.mxu0
    %v774 = vadd.f32 %v724, %v773
    %v775 = vand.u32 %v52, 4294901760
    %776 = vmatmul.f32.gmra.mxu0 %v775
    %v777 = vpop.f32.mrf.mxu0
    %v778 = vadd.f32 %v728, %v777
    %v779 = vand.u32 %v55, 4294901760
    %780 = vmatmul.f32.gmra.mxu0 %v779
    %v781 = vpop.f32.mrf.mxu0
    %v782 = vadd.f32 %v732, %v781
    %v783 = vand.u32 %v58, 4294901760
    %784 = vmatmul.f32.gmra.mxu0 %v783
    %v785 = vpop.f32.mrf.mxu0
    %v786 = vadd.f32 %v736, %v785
    %v787 = vand.u32 %v61, 4294901760
    %788 = vmatmul.f32.gmra.mxu0 %v787
    %v789 = vpop.f32.mrf.mxu0
    %v790 = vadd.f32 %v740, %v789
    %v791 = vand.u32 %v64, 4294901760
    %792 = vmatmul.f32.gmra.mxu0 %v791
    %v793 = vpop.f32.mrf.mxu0
    %v794 = vadd.f32 %v744, %v793
    %v795 = vand.u32 %v67, 4294901760
    %796 = vmatmul.f32.gmra.mxu0 %v795
    %v797 = vpop.f32.mrf.mxu0
    %v798 = vadd.f32 %v748, %v797
    %799 = vdwg.mxu0
    %v800 = vld [vmem:[#allocation2] sm:$0xff]
    %v801 = vld [vmem:[#allocation2 + $0x8] sm:$0xff]
    %v802 = vld [vmem:[#allocation2 + $0x10] sm:$0xff]
    %v803 = vld [vmem:[#allocation2 + $0x18] sm:$0xff]
    %v804 = vld [vmem:[#allocation2 + $0x20] sm:$0xff]
    %v805 = vld [vmem:[#allocation2 + $0x28] sm:$0xff]
    %v806 = vld [vmem:[#allocation2 + $0x30] sm:$0xff]
    %v807 = vld [vmem:[#allocation2 + $0x38] sm:$0xff]
    %v808 = vld [vmem:[#allocation2 + $0x40] sm:$0xff]
    %v809 = vld [vmem:[#allocation2 + $0x48] sm:$0xff]
    %v810 = vld [vmem:[#allocation2 + $0x50] sm:$0xff]
    %v811 = vld [vmem:[#allocation2 + $0x58] sm:$0xff]
    %v812 = vld [vmem:[#allocation2 + $0x60] sm:$0xff]
    %v813 = vld [vmem:[#allocation2 + $0x68] sm:$0xff]
    %v814 = vld [vmem:[#allocation2 + $0x70] sm:$0xff]
    %v815 = vld [vmem:[#allocation2 + $0x78] sm:$0xff]
    %v816 = vmul.f32 %v407, 0.25
    %v817 = vmul.f32 %v770, 0.25
    %v818 = vmul.f32 %v411, 0.25
    %v819 = vmul.f32 %v774, 0.25
    %v820 = vmul.f32 %v415, 0.25
    %v821 = vmul.f32 %v778, 0.25
    %v822 = vmul.f32 %v419, 0.25
    %v823 = vmul.f32 %v782, 0.25
    %v824 = vmul.f32 %v423, 0.25
    %v825 = vmul.f32 %v786, 0.25
    %v826 = vmul.f32 %v427, 0.25
    %v827 = vmul.f32 %v790, 0.25
    %v828 = vmul.f32 %v431, 0.25
    %v829 = vmul.f32 %v794, 0.25
    %v830 = vmul.f32 %v435, 0.25
    %v831 = vmul.f32 %v798, 0.25
    %v832 = vadd.f32 %v800, %v816
    %v833 = vadd.f32 %v801, %v817
    %v834 = vadd.f32 %v802, %v818
    %v835 = vadd.f32 %v803, %v819
    %v836 = vadd.f32 %v804, %v820
    %v837 = vadd.f32 %v805, %v821
    %v838 = vadd.f32 %v806, %v822
    %v839 = vadd.f32 %v807, %v823
    %v840 = vadd.f32 %v808, %v824
    %v841 = vadd.f32 %v809, %v825
    %v842 = vadd.f32 %v810, %v826
    %v843 = vadd.f32 %v811, %v827
    %v844 = vadd.f32 %v812, %v828
    %v845 = vadd.f32 %v813, %v829
    %v846 = vadd.f32 %v814, %v830
    %v847 = vadd.f32 %v815, %v831
    %848 = vst [vmem:[#allocation5] sm:$0xff] %v832
    %849 = vst [vmem:[#allocation5 + $0x8] sm:$0xff] %v833
    %850 = vst [vmem:[#allocation5 + $0x10] sm:$0xff] %v834
    %851 = vst [vmem:[#allocation5 + $0x18] sm:$0xff] %v835
    %852 = vst [vmem:[#allocation5 + $0x20] sm:$0xff] %v836
    %853 = vst [vmem:[#allocation5 + $0x28] sm:$0xff] %v837
    %854 = vst [vmem:[#allocation5 + $0x30] sm:$0xff] %v838
    %855 = vst [vmem:[#allocation5 + $0x38] sm:$0xff] %v839
    %856 = vst [vmem:[#allocation5 + $0x40] sm:$0xff] %v840
    %857 = vst [vmem:[#allocation5 + $0x48] sm:$0xff] %v841
    %858 = vst [vmem:[#allocation5 + $0x50] sm:$0xff] %v842
    %859 = vst [vmem:[#allocation5 + $0x58] sm:$0xff] %v843
    %860 = vst [vmem:[#allocation5 + $0x60] sm:$0xff] %v844
    %861 = vst [vmem:[#allocation5 + $0x68] sm:$0xff] %v845
    %862 = vst [vmem:[#allocation5 + $0x70] sm:$0xff] %v846
    %863 = vst [vmem:[#allocation5 + $0x78] sm:$0xff] %v847
    // Predicated region
    $region18: #{tpu_custom_call.1} parent=1 // pred_check
      _
    $region19: #{tpu_custom_call.1} parent=1 // pred_check_branch
      %865 = sbr.rel (0) target = $region21
    $region20: #{tpu_custom_call.1} parent=1 // pred_region
      %867 = vsyncadd [#allocation4], 0
      %s868 = sshll.u32 [#allocation5], 4
      %s869 = int_to_ptr.vmem [resolvable:$true] %s868
      %s870 = sshll.u32 %s3, 4
      %s871 = int_to_ptr.hbm [resolvable:$true] %s870
      %876 = dma.vmem_to_hbm [thread:$0]  %s869, 2048, %s871, [#allocation4], 256, 256, 16
    $region21: #{tpu_custom_call.1} parent=1 // pred_fallthru
      _
    // Predicated region
    $region22: #{tpu_custom_call.1} parent=1 // pred_check
      _
    $region23: #{tpu_custom_call.1} parent=1 // pred_check_branch
      %878 = sbr.rel (0) target = $region25
    $region24: #{tpu_custom_call.1} parent=1 // pred_region
      %880 = dma.done [#allocation4], 2048
    $region25: #{tpu_custom_call.1} parent=1 // pred_fallthru
      _
    %881 = vsyncpa [#allocation3], 1
    %882 = vsyncpa [#allocation4], 1

</llo_original>
